<compile_context>
chip_gen: v7x
topology: tpu7x:2x2x1
jax: 0.10.0
libtpu: 0.0.40
codegen_flags: <defaults>
</compile_context>

<pallas_src>
import functools

import jax
import jax.numpy as jnp
from jax.experimental import pallas as pl
from jax.experimental.pallas import tpu as pltpu

_LANE = 128
_SUBLANE = 8


def _round_up(x: int, m: int) -> int:
    return (x + m - 1) // m * m


# ---------------------------------------------------------------------------
# Kernel bodies
# ---------------------------------------------------------------------------

def _heads_kernel(x_ref, w_ref, b_ref, o_ref, *, use_activation: bool):
    """Fused-head FCLayer body, full-K (no reduction axis, no scratch).

    Grid = (head, m_tile), both 'parallel' (one head per TensorCore on v7x).
      x_ref: (tm, K)   w_ref: (K, N)   b_ref: (1, N)   o_ref: (tm, N)
    """
    x = x_ref[...]
    # nn.Dropout is identity at eval time (rate is 0 in MultimodalCLF anyway).
    # TODO(synk): training-mode dropout (pltpu.prng_seed + prng_random_bits).
    if use_activation:
        x = jnp.maximum(x, jnp.zeros_like(x))
    w = w_ref[...]
    if x.dtype != w.dtype:
        x = x.astype(w.dtype)          # f32 activations, bf16 weights
    o_ref[...] = (jnp.dot(x, w, preferred_element_type=jnp.float32)
                  + b_ref[...]).astype(o_ref.dtype)


def _heads_kernel_ktiled(x_ref, w_ref, b_ref, o_ref, acc_ref, *,
                         use_activation: bool):
    """Fallback for very large K: trailing 'arbitrary' K axis + f32 acc."""
    k = pl.program_id(2)

    @pl.when(k == 0)
    def _():
        acc_ref[...] = jnp.zeros_like(acc_ref)

    x = x_ref[...]
    if use_activation:
        x = jnp.maximum(x, jnp.zeros_like(x))
    w = w_ref[...]
    if x.dtype != w.dtype:
        x = x.astype(w.dtype)
    acc_ref[...] += jnp.dot(x, w, preferred_element_type=jnp.float32)

    @pl.when(k == pl.num_programs(2) - 1)
    def _():
        o_ref[...] = (acc_ref[...] + b_ref[...]).astype(o_ref.dtype)


# ---------------------------------------------------------------------------
# One-time parameter preparation
# ---------------------------------------------------------------------------

def prepare_multimodal_heads(img_weight, img_bias, txt_weight, txt_bias, *,
                             param_dtype=jnp.bfloat16):
    """Transpose + stack + K-pad both heads' parameters ONCE.

    Weights follow the PyTorch nn.Linear convention (N, K).  Returns a dict:
      w:  (2, Kmax, N) param_dtype  — transposed, K zero-padded to a common
                                      Kmax rounded up to a multiple of 128
      b:  (2, 1, N)    float32
    bf16 default halves the dominant weight-DMA bytes; no per-call weight.T.
    """
    n_img, k_img = img_weight.shape
    n_txt, k_txt = txt_weight.shape
    assert n_img == n_txt, "both classifier heads share num_classes"
    n = int(n_img)
    k_max = _round_up(max(k_img, k_txt), _LANE)

    w = jnp.zeros((2, k_max, n), param_dtype)
    w = w.at[0, :k_img, :].set(img_weight.T.astype(param_dtype))
    w = w.at[1, :k_txt, :].set(txt_weight.T.astype(param_dtype))
    b = jnp.zeros((2, 1, n), jnp.float32)
    b = b.at[0, 0, :].set(img_bias.astype(jnp.float32))
    b = b.at[1, 0, :].set(txt_bias.astype(jnp.float32))
    return {"w": w, "b": b, "k_dims": (int(k_img), int(k_txt)),
            "num_classes": n, "k_max": int(k_max)}


# ---------------------------------------------------------------------------
# Fused forward of both classifier heads
# ---------------------------------------------------------------------------

def multimodal_clf_heads(img_feat, txt_pooled, params, *,
                         use_activation: bool = False,
                         block_m: int = 128, block_k: int = 1024,
                         max_weight_block_bytes: int = 8 * 1024 * 1024):
    """Pallas equivalent of the classifier part of MultimodalCLF.forward.

    img_feat:   (M, K_img)  backbone image features
    txt_pooled: (M, K_txt)  BERT pooler_output
    Returns (img_logits, txt_logits), each (M, num_classes).
    """
    w, b = params["w"], params["b"]
    k_img, k_txt = params["k_dims"]
    n = params["num_classes"]
    k_max = params["k_max"]

    m = img_feat.shape[0]
    assert txt_pooled.shape[0] == m
    assert img_feat.shape[1] == k_img and txt_pooled.shape[1] == k_txt
    act_dtype = img_feat.dtype

    # Stack activations to (2, M, Kmax).  Zero K-padding matches the
    # zero-padded weight rows, so padded columns contribute nothing.
    x = jnp.zeros((2, m, k_max), act_dtype)
    x = x.at[0, :, :k_img].set(img_feat)
    x = x.at[1, :, :k_txt].set(txt_pooled.astype(act_dtype))

    tm = m if m <= block_m else block_m
    grid_m = pl.cdiv(m, tm)

    x_b = x.dtype.itemsize
    w_b = w.dtype.itemsize
    n_lanes = _round_up(n, _LANE)          # physical VMEM lane padding

    out_shape = jax.ShapeDtypeStruct((2, m, n), act_dtype)
    w_block_bytes = k_max * n_lanes * w_b

    if w_block_bytes <= max_weight_block_bytes:
        # Common path: one full-K weight block per head; no acc scratch.
        grid = (2, grid_m)
        in_specs = [
            pl.BlockSpec((pl.Squeezed(), tm, k_max), lambda h, i: (h, i, 0)),
            pl.BlockSpec((pl.Squeezed(), k_max, n), lambda h, i: (h, 0, 0)),
            pl.BlockSpec((pl.Squeezed(), 1, n), lambda h, i: (h, 0, 0)),
        ]
        out_specs = pl.BlockSpec((pl.Squeezed(), tm, n),
                                 lambda h, i: (h, i, 0))
        scratch_shapes = []
        kernel = functools.partial(_heads_kernel,
                                   use_activation=use_activation)
        dim_sem = ("parallel", "parallel")
        need = 2 * (tm * k_max * x_b + k_max * n_lanes * w_b
                    + _SUBLANE * n_lanes * 4 + tm * n_lanes * x_b)
    else:
        # Fallback for very large K: tile K on a trailing 'arbitrary' axis.
        tk = min(block_k, k_max)
        while k_max % tk:                  # k_max is a multiple of 128
            tk -= _LANE
        grid = (2, grid_m, k_max // tk)
        in_specs = [
            pl.BlockSpec((pl.Squeezed(), tm, tk), lambda h, i, kk: (h, i, kk)),
            pl.BlockSpec((pl.Squeezed(), tk, n), lambda h, i, kk: (h, kk, 0)),
            pl.BlockSpec((pl.Squeezed(), 1, n), lambda h, i, kk: (h, 0, 0)),
        ]
        out_specs = pl.BlockSpec((pl.Squeezed(), tm, n),
                                 lambda h, i, kk: (h, i, 0))
        scratch_shapes = [pltpu.VMEM((tm, n), jnp.float32)]
        kernel = functools.partial(_heads_kernel_ktiled,
                                   use_activation=use_activation)
        dim_sem = ("parallel", "parallel", "arbitrary")
        need = (2 * (tm * tk * x_b + tk * n_lanes * w_b
                     + _SUBLANE * n_lanes * 4 + tm * n_lanes * x_b)
                + tm * n_lanes * 4)

    # Modest, chip-safe scoped-VMEM request (v7x has 64 MiB physical per TC;
    # requesting only what the kernel needs leaves VMEM for XLA fusions).
    vmem_limit = int(min(max(2 * need, 2 * 1024 * 1024), 32 * 1024 * 1024))

    cost = pl.CostEstimate(
        flops=2 * 2 * m * k_max * n,
        transcendentals=0,
        bytes_accessed=int(x.size * x_b + w.size * w_b + b.size * 4
                           + 2 * m * n * x_b),
    )

    out = pl.pallas_call(
        kernel,
        out_shape=out_shape,
        grid_spec=pltpu.PrefetchScalarGridSpec(
            num_scalar_prefetch=0,
            grid=grid,
            in_specs=in_specs,
            out_specs=out_specs,
            scratch_shapes=scratch_shapes,
        ),
        compiler_params=pltpu.CompilerParams(
            dimension_semantics=dim_sem,
            vmem_limit_bytes=vmem_limit,
        ),
        cost_estimate=cost,
    )(x, w, b)

    return out[0], out[1]


def init_linear_params(key, input_dim: int, output_dim: int):
    """nn.Linear default init: U(-1/sqrt(in), 1/sqrt(in))."""
    kw, kb = jax.random.split(key)
    bound = 1.0 / jnp.sqrt(jnp.float32(input_dim))
    weight = jax.random.uniform(
        kw, (output_dim, input_dim), jnp.float32, minval=-bound, maxval=bound)
    bias = jax.random.uniform(
        kb, (output_dim,), jnp.float32, minval=-bound, maxval=bound)
    return weight, bias


if __name__ == "__main__":
    key = jax.random.PRNGKey(0)
    k_img_x, k_txt_x, k_img_p, k_txt_p = jax.random.split(key, 4)

    # Small stand-ins for EfficientNet-b0 features (1000-d in the real model)
    # and the BERT pooler_output (768-d); num_classes matches the default (15).
    batch, img_dim, txt_dim, num_classes = 8, 256, 192, 15

    img_feat = jax.random.normal(k_img_x, (batch, img_dim), jnp.float32)
    txt_pooled = jax.random.normal(k_txt_x, (batch, txt_dim), jnp.float32)

    img_w, img_b = init_linear_params(k_img_p, img_dim, num_classes)
    txt_w, txt_b = init_linear_params(k_txt_p, txt_dim, num_classes)

    # Pure-JAX references (dropout identity, no activation in the heads).
    img_ref = img_feat @ img_w.T + img_b
    txt_ref = txt_pooled @ txt_w.T + txt_b

    # 1) f32-parameter path (exact check, fused full-K kernel).
    params_f32 = prepare_multimodal_heads(
        img_w, img_b, txt_w, txt_b, param_dtype=jnp.float32)
    img_logits, txt_logits = multimodal_clf_heads(
        img_feat, txt_pooled, params_f32)
    img_logits, txt_logits = jax.block_until_ready((img_logits, txt_logits))
    assert img_logits.shape == (batch, num_classes)
    assert txt_logits.shape == (batch, num_classes)
    assert jnp.allclose(img_logits, img_ref, atol=1e-4, rtol=1e-4)
    assert jnp.allclose(txt_logits, txt_ref, atol=1e-4, rtol=1e-4)

    # 2) bf16-parameter default path (halved weight DMA; relaxed tolerance —
    #    the matmul runs bf16 x bf16 with f32 accumulation).
    params_bf16 = prepare_multimodal_heads(img_w, img_b, txt_w, txt_b)
    img_bf16, txt_bf16 = jax.block_until_ready(
        multimodal_clf_heads(img_feat, txt_pooled, params_bf16))
    assert jnp.allclose(img_bf16, img_ref, atol=5e-2, rtol=5e-2)
    assert jnp.allclose(txt_bf16, txt_ref, atol=5e-2, rtol=5e-2)

    # 3) Exercise the K-tiled fallback path (forced) for robustness.
    img_kt, txt_kt = jax.block_until_ready(
        multimodal_clf_heads(img_feat, txt_pooled, params_f32,
                             block_k=128, max_weight_block_bytes=0))
    assert jnp.allclose(img_kt, img_ref, atol=1e-4, rtol=1e-4)
    assert jnp.allclose(txt_kt, txt_ref, atol=1e-4, rtol=1e-4)

    print("KERNEL_OK")
</pallas_src>

<mosaic_0001>
module attributes {stable_mosaic.version = 11 : i64} {
  func.func @_heads_kernel(%arg0: i32, %arg1: i32, %arg2: memref<1x8x256xf32, #tpu.memory_space<vmem>>, %arg3: memref<1x256x15xf32, #tpu.memory_space<vmem>>, %arg4: memref<1x1x15xf32, #tpu.memory_space<vmem>>, %arg5: memref<1x8x15xf32, #tpu.memory_space<vmem>>) attributes {dimension_semantics = [#tpu.dimension_semantics<parallel>, #tpu.dimension_semantics<parallel>], iteration_bounds = array<i64: 2, 1>, scalar_prefetch = 0 : i64, scratch_operands = 0 : i64, tpu.core_type = #tpu.core_type<tc>, window_params = [{transform_indices = @transform_0, window_bounds = array<i64: 1, 8, 256>}, {transform_indices = @transform_1, window_bounds = array<i64: 1, 256, 15>}, {transform_indices = @transform_2, window_bounds = array<i64: 1, 1, 15>}, {transform_indices = @transform_3, window_bounds = array<i64: 1, 8, 15>}]} {
    %c0 = arith.constant 0 : index
    %c0_0 = arith.constant 0 : index
    %c0_1 = arith.constant 0 : index
    %0 = vector.load %arg2[%c0, %c0_0, %c0_1] : memref<1x8x256xf32, #tpu.memory_space<vmem>>, vector<1x8x256xf32>
    %1 = vector.shape_cast %0 : vector<1x8x256xf32> to vector<8x256xf32>
    %c0_2 = arith.constant 0 : index
    %c0_3 = arith.constant 0 : index
    %c0_4 = arith.constant 0 : index
    %2 = vector.load %arg3[%c0_2, %c0_3, %c0_4] : memref<1x256x15xf32, #tpu.memory_space<vmem>>, vector<1x256x15xf32>
    %3 = vector.shape_cast %2 : vector<1x256x15xf32> to vector<256x15xf32>
    %cst = arith.constant dense<0.000000e+00> : vector<8x15xf32>
    %4 = tpu.matmul %1, %3, %cst {dimension_numbers = #tpu.dot_dimension_numbers<[1], [0], [0], [1], [0, 0, 1, 1], [], []>} : vector<8x256xf32>, vector<256x15xf32>, vector<8x15xf32> -> vector<8x15xf32>
    %c0_5 = arith.constant 0 : index
    %c0_6 = arith.constant 0 : index
    %c0_7 = arith.constant 0 : index
    %5 = vector.load %arg4[%c0_5, %c0_6, %c0_7] : memref<1x1x15xf32, #tpu.memory_space<vmem>>, vector<1x1x15xf32>
    %6 = vector.shape_cast %5 : vector<1x1x15xf32> to vector<1x15xf32>
    %7 = vector.broadcast %6 : vector<1x15xf32> to vector<8x15xf32>
    %8 = arith.addf %4, %7 : vector<8x15xf32>
    %c0_8 = arith.constant 0 : index
    %c0_9 = arith.constant 0 : index
    %c0_10 = arith.constant 0 : index
    %9 = vector.load %arg5[%c0_8, %c0_9, %c0_10] : memref<1x8x15xf32, #tpu.memory_space<vmem>>, vector<1x8x15xf32>
    %10 = vector.shape_cast %9 : vector<1x8x15xf32> to vector<8x15xf32>
    %11 = vector.shape_cast %8 : vector<8x15xf32> to vector<1x8x15xf32>
    tpu.vector_store %arg5[%c0_8, %c0_9, %c0_10], %11 {strides = array<i32>} : memref<1x8x15xf32, #tpu.memory_space<vmem>>, vector<1x8x15xf32>,
    return
  }
  func.func @transform_0(%arg0: i32, %arg1: i32) -> (i32, i32, i32) {
    %c0_i32 = arith.constant 0 : i32
    %c0_i32_0 = arith.constant 0 : i32
    return %arg0, %arg1, %c0_i32 : i32, i32, i32
  }
  func.func @transform_1(%arg0: i32, %arg1: i32) -> (i32, i32, i32) {
    %c0_i32 = arith.constant 0 : i32
    %c0_i32_0 = arith.constant 0 : i32
    %c0_i32_1 = arith.constant 0 : i32
    return %arg0, %c0_i32, %c0_i32_0 : i32, i32, i32
  }
  func.func @transform_2(%arg0: i32, %arg1: i32) -> (i32, i32, i32) {
    %c0_i32 = arith.constant 0 : i32
    %c0_i32_0 = arith.constant 0 : i32
    %c0_i32_1 = arith.constant 0 : i32
    return %arg0, %c0_i32, %c0_i32_0 : i32, i32, i32
  }
  func.func @transform_3(%arg0: i32, %arg1: i32) -> (i32, i32, i32) {
    %c0_i32 = arith.constant 0 : i32
    %c0_i32_0 = arith.constant 0 : i32
    return %arg0, %arg1, %c0_i32 : i32, i32, i32
  }
}

</mosaic_0001>

<llo_original>
// kernel: tpu_custom_call.1
$region0: #{tpu_custom_call.1}
  #allocation0 [shape = 'u32[]', space=smem, size = 0x4, offset = 0x4, fixed_abs, tag = 'smem constant byte address 0x4 - core index']
  #allocation1 [shape = 'u32[144,128]{1,0:T(1,128)}', space=vmem, size = 0x12000, scoped, tag = 'internal scratch']
  %s0 = inlined_call_operand.vmem [shape: f32[2,8,256], index: 0, kind: input, shape index: {}]
  %s1 = inlined_call_operand.vmem [shape: f32[2,256,15], index: 1, kind: input, shape index: {}]
  %s2 = inlined_call_operand.vmem [shape: f32[2,1,15], index: 2, kind: input, shape index: {}]
  %s3 = inlined_call_operand.hbm [shape: f32[2,8,15], index: 3, kind: output, shape index: {}]
  %s4 = sld [smem:[#allocation0]]
  $region45: #{tpu_custom_call.1} parent=0
    _
  %s6 = ssub.s32 1, %s4
  %s7 = scalar_select 0, %s6, %s4
  $region1: #{tpu_custom_call.1} parent=0
    #allocation2 [shape = 'u8[8192]{0}', space=vmem, size = 0x2000, scoped, tag = 'output window, operand 0']
    #allocation3 [shape = 's32[2]{0}', space=sflag, size = 0x8, scoped, tag = 'scoped memory for tpu_custom_call.1']
    %8 = vsyncpa [#allocation3], 0
    %s9 = scalar_lea.sflag [#allocation3], 1
    %10 = vsyncpa %s9, 0
    loop: start=0, step=1, limit=4
    $region2: #{tpu_custom_call.1} parent=1 // loop_pre_header
      _
    $region3: #{tpu_custom_call.1} parent=1 // loop_header
      %s12 = sphi 0, %s16
      %p13 = scmp.ge.s32.totalorder %s12, 4
      %s19 = sphi 0, %s31
      %s20 = sphi 0, %s27
      %s21 = sphi 0, %s19
      %s22 = sphi 0, %s20
      %s23 = sphi 0, %s21
      %s24 = sphi 0, %s22
      %s36 = sphi 0, %s38
      %s39 = sphi 0, %s36
      %s40 = sphi 0, %s39
      %s56 = sphi 0, %s40
      %s62 = sphi 0, %s64
      %s65 = sphi 0, %s62
      %s66 = sphi 0, %s65
      %s82 = sphi 0, %s66
      %s88 = sphi 0, %s90
      %s91 = sphi 0, %s88
      %s92 = sphi 0, %s91
      %s108 = sphi 0, %s92
      %s116 = sphi 0, %s118
      %s119 = sphi 0, %s116
      %s120 = sphi 0, %s119
      %s136 = sphi 0, %s120
    $region4: #{tpu_custom_call.1} parent=1 // loop_header_branch
      %15 = sbr.rel (%p13) target = $region8
    $region5: #{tpu_custom_call.1} parent=1 // loop_body
      %s17 = ssub.s32 %s12, 1
      %s18 = ssub.s32 %s12, 2
      %s25 = sadd.s32 1, %s20
      %p26 = scmp.ge.s32.totalorder %s25, 1
      %s27 = scalar_select %p26, 0, %s25
      %s28 = sadd.s32 1, %s19
      %s29 = scalar_select %p26, %s28, %s19
      %p30 = scmp.ge.s32.totalorder %s29, 2
      %s31 = scalar_select %p30, 0, %s29
      %s32 = ssub.s32 %s19, %s31
      %s33 = ssub.s32 %s20, %s27
      %s34 = sor.u32 %s32, %s33
      %p35 = scmp.eq.s32.totalorder %s34, 0
      %s37 = sadd.s32 %s36, 1
      %s38 = scalar_select %p35, %s36, %s37
      %p41 = pneg %p35
      %p42 = scmp.eq.s32.totalorder %s12, 1
      %p43 = por %p41, %p42
      %p44 = scmp.ne.s32.totalorder %s36, %s39
      %p45 = scmp.eq.s32.totalorder %s12, 0
      %p46 = por %p44, %p45
      %p47 = scmp.ne.s32.totalorder %s36, %s39
      %p48 = scmp.eq.s32.totalorder %s17, 1
      %p49 = por %p47, %p48
      %p50 = scmp.ne.s32.totalorder %s39, %s40
      %p51 = scmp.eq.s32.totalorder %s17, 0
      %p52 = por %p50, %p51
      %p53 = scmp.ne.s32.totalorder %s39, %s40
      %p54 = scmp.eq.s32.totalorder %s18, 1
      %p55 = por %p53, %p54
      %p57 = scmp.ne.s32.totalorder %s40, %s56
      %p58 = scmp.eq.s32.totalorder %s18, 0
      %p59 = por %p57, %p58
      %s60 = ssub.s32 %s19, %s31
      %p61 = scmp.eq.s32.totalorder %s60, 0
      %s63 = sadd.s32 %s62, 1
      %s64 = scalar_select %p61, %s62, %s63
      %p67 = pneg %p61
      %p68 = scmp.eq.s32.totalorder %s12, 1
      %p69 = por %p67, %p68
      %p70 = scmp.ne.s32.totalorder %s62, %s65
      %p71 = scmp.eq.s32.totalorder %s12, 0
      %p72 = por %p70, %p71
      %p73 = scmp.ne.s32.totalorder %s62, %s65
      %p74 = scmp.eq.s32.totalorder %s17, 1
      %p75 = por %p73, %p74
      %p76 = scmp.ne.s32.totalorder %s65, %s66
      %p77 = scmp.eq.s32.totalorder %s17, 0
      %p78 = por %p76, %p77
      %p79 = scmp.ne.s32.totalorder %s65, %s66
      %p80 = scmp.eq.s32.totalorder %s18, 1
      %p81 = por %p79, %p80
      %p83 = scmp.ne.s32.totalorder %s66, %s82
      %p84 = scmp.eq.s32.totalorder %s18, 0
      %p85 = por %p83, %p84
      %s86 = ssub.s32 %s19, %s31
      %p87 = scmp.eq.s32.totalorder %s86, 0
      %s89 = sadd.s32 %s88, 1
      %s90 = scalar_select %p87, %s88, %s89
      %p93 = pneg %p87
      %p94 = scmp.eq.s32.totalorder %s12, 1
      %p95 = por %p93, %p94
      %p96 = scmp.ne.s32.totalorder %s88, %s91
      %p97 = scmp.eq.s32.totalorder %s12, 0
      %p98 = por %p96, %p97
      %p99 = scmp.ne.s32.totalorder %s88, %s91
      %p100 = scmp.eq.s32.totalorder %s17, 1
      %p101 = por %p99, %p100
      %p102 = scmp.ne.s32.totalorder %s91, %s92
      %p103 = scmp.eq.s32.totalorder %s17, 0
      %p104 = por %p102, %p103
      %p105 = scmp.ne.s32.totalorder %s91, %s92
      %p106 = scmp.eq.s32.totalorder %s18, 1
      %p107 = por %p105, %p106
      %p109 = scmp.ne.s32.totalorder %s92, %s108
      %p110 = scmp.eq.s32.totalorder %s18, 0
      %p111 = por %p109, %p110
      %s112 = ssub.s32 %s19, %s31
      %s113 = ssub.s32 %s20, %s27
      %s114 = sor.u32 %s112, %s113
      %p115 = scmp.eq.s32.totalorder %s114, 0
      %s117 = sadd.s32 %s116, 1
      %s118 = scalar_select %p115, %s116, %s117
      %p121 = pneg %p115
      %p122 = scmp.eq.s32.totalorder %s12, 1
      %p123 = por %p121, %p122
      %p124 = scmp.ne.s32.totalorder %s116, %s119
      %p125 = scmp.eq.s32.totalorder %s12, 0
      %p126 = por %p124, %p125
      %p127 = scmp.ne.s32.totalorder %s116, %s119
      %p128 = scmp.eq.s32.totalorder %s17, 1
      %p129 = por %p127, %p128
      %p130 = scmp.ne.s32.totalorder %s119, %s120
      %p131 = scmp.eq.s32.totalorder %s17, 0
      %p132 = por %p130, %p131
      %p133 = scmp.ne.s32.totalorder %s119, %s120
      %p134 = scmp.eq.s32.totalorder %s18, 1
      %p135 = por %p133, %p134
      %p137 = scmp.ne.s32.totalorder %s120, %s136
      %p138 = scmp.eq.s32.totalorder %s18, 0
      %p139 = por %p137, %p138
      %p140 = scmp.le.s32.totalorder 1, %s12
      %p141 = scmp.lt.s32.totalorder %s12, 3
      %p142 = pnand %p140, %p141
      %p143 = pneg %p142
      // Predicated region
      $region9: #{tpu_custom_call.1} parent=5 // pred_check
        _
      $region10: #{tpu_custom_call.1} parent=5 // pred_check_branch
        %145 = sbr.rel (%p142) target = $region12
      $region11: #{tpu_custom_call.1} parent=5 // pred_region
        %s146 = ssub.s32 %s12, 1
      $region12: #{tpu_custom_call.1} parent=5 // pred_fallthru
        _
      %p147 = scmp.lt.s32.totalorder %s12, 2
      // Predicated region
      $region13: #{tpu_custom_call.1} parent=5 // pred_check
        %p148 = pneg %p147
      $region14: #{tpu_custom_call.1} parent=5 // pred_check_branch
        %150 = sbr.rel (%p148) target = $region16
      $region15: #{tpu_custom_call.1} parent=5 // pred_region
        // Predicated region
        $region17: #{tpu_custom_call.1} parent=15 // pred_check
          %p151 = pneg %p46
        $region18: #{tpu_custom_call.1} parent=15 // pred_check_branch
          %153 = sbr.rel (%p151) target = $region20
        $region19: #{tpu_custom_call.1} parent=15 // pred_region
          %p154 = scmp.lt.s32.totalorder %s19, 1
          %s155 = scalar_select %p154, %s19, 1
          %p156 = scmp.lt.s32.totalorder %s20, 0
          %s157 = scalar_select %p156, %s20, 0
          %s158 = smul.addr %s157, 2
          %s159 = smul.addr %s155, 2
          %s160 = sadd.s32 %s158, %s159
          %s161 = smul.addr %s160, 8
          %s162 = scalar_lea.vmem %s0, %s161
        $region20: #{tpu_custom_call.1} parent=15 // pred_fallthru
          _
        // Predicated region
        $region21: #{tpu_custom_call.1} parent=15 // pred_check
          %p163 = pneg %p72
        $region22: #{tpu_custom_call.1} parent=15 // pred_check_branch
          %165 = sbr.rel (%p163) target = $region24
        $region23: #{tpu_custom_call.1} parent=15 // pred_region
          %p166 = scmp.lt.s32.totalorder %s19, 1
          %s167 = scalar_select %p166, %s19, 1
          %s168 = smul.addr %s167, 32
          %s169 = smul.addr %s168, 8
          %s170 = scalar_lea.vmem %s1, %s169
        $region24: #{tpu_custom_call.1} parent=15 // pred_fallthru
          _
        // Predicated region
        $region25: #{tpu_custom_call.1} parent=15 // pred_check
          %p171 = pneg %p98
        $region26: #{tpu_custom_call.1} parent=15 // pred_check_branch
          %173 = sbr.rel (%p171) target = $region28
        $region27: #{tpu_custom_call.1} parent=15 // pred_region
          %p174 = scmp.lt.s32.totalorder %s19, 1
          %s175 = scalar_select %p174, %s19, 1
          %s176 = scalar_lea.vmem %s2, %s175
        $region28: #{tpu_custom_call.1} parent=15 // pred_fallthru
          _
      $region16: #{tpu_custom_call.1} parent=5 // pred_fallthru
        _
      %p177 = scmp.le.s32.totalorder 1, %s12
      %p178 = scmp.lt.s32.totalorder %s12, 3
      %p179 = pnand %p177, %p178
      %p180 = pneg %p179
      // Predicated region
      $region29: #{tpu_custom_call.1} parent=5 // pred_check
        _
      $region30: #{tpu_custom_call.1} parent=5 // pred_check_branch
        %182 = sbr.rel (%p179) target = $region32
      $region31: #{tpu_custom_call.1} parent=5 // pred_region
        %s183 = ssub.s32 %s12, 1
        %p184 = scmp.lt.s32.totalorder %s21, 1
        %s185 = scalar_select %p184, %s21, 1
        %p186 = scmp.lt.s32.totalorder %s22, 0
        %s187 = scalar_select %p186, %s22, 0
        %s188 = smul.addr %s187, 2
        %s189 = smul.addr %s185, 2
        %s190 = sadd.s32 %s188, %s189
        %s191 = smul.addr %s190, 8
        %s192 = scalar_lea.vmem %s0, %s191
        %p193 = pneg %p52
        %p194 = pneg %p49
        %p195 = scmp.lt.s32.totalorder %s21, 1
        %s196 = scalar_select %p195, %s21, 1
        %s197 = smul.addr %s196, 32
        %s198 = smul.addr %s197, 8
        %s199 = scalar_lea.vmem %s1, %s198
        %p200 = pneg %p78
        %p201 = pneg %p75
        %p202 = scmp.lt.s32.totalorder %s21, 1
        %s203 = scalar_select %p202, %s21, 1
        %s204 = scalar_lea.vmem %s2, %s203
        %p205 = pneg %p104
        %p206 = pneg %p101
        %p207 = pneg %p132
        %p208 = pneg %p129
        %s209 = sand.u32 %s119, 1
        %s210 = scalar_lea.sflag [#allocation3], %s209
        %s211 = sand.u32 %s119, 1
        %s212 = smul.addr %s211, 8
        %s213 = scalar_lea.vmem [#allocation2], %s212
        %p214 = scmp.lt.s32.totalorder %s21, 1
        %s215 = scalar_select %p214, %s21, 1
        %p216 = scmp.lt.s32.totalorder %s22, 0
        %s217 = scalar_select %p216, %s22, 0
        %s218 = smul.addr %s217, 2
        %s219 = smul.addr %s215, 2
        %s220 = sadd.s32 %s218, %s219
        %s221 = smul.addr %s220, 8
        %s222 = scalar_lea.vmem %s0, %s221
        %p223 = scmp.lt.s32.totalorder %s21, 1
        %s224 = scalar_select %p223, %s21, 1
        %s225 = smul.addr %s224, 32
        %s226 = smul.addr %s225, 8
        %s227 = scalar_lea.vmem %s1, %s226
        %p228 = scmp.lt.s32.totalorder %s21, 1
        %s229 = scalar_select %p228, %s21, 1
        %s230 = scalar_lea.vmem %s2, %s229
        %v231 = vld [vmem:[%s222] sm:$0xff]
        %v232 = vld [vmem:[%s222 + $0x8] sm:$0xff]
        %v233 = vld [vmem:[%s227] sm:$0xff]
        %v234 = vld [vmem:[%s227 + $0x8] sm:$0xff]
        %v235 = vld [vmem:[%s227 + $0x10] sm:$0xff]
        %v236 = vld [vmem:[%s227 + $0x18] sm:$0xff]
        %v237 = vld [vmem:[%s227 + $0x20] sm:$0xff]
        %v238 = vld [vmem:[%s227 + $0x28] sm:$0xff]
        %v239 = vld [vmem:[%s227 + $0x30] sm:$0xff]
        %v240 = vld [vmem:[%s227 + $0x38] sm:$0xff]
        %v241 = vld [vmem:[%s227 + $0x40] sm:$0xff]
        %v242 = vld [vmem:[%s227 + $0x48] sm:$0xff]
        %v243 = vld [vmem:[%s227 + $0x50] sm:$0xff]
        %v244 = vld [vmem:[%s227 + $0x58] sm:$0xff]
        %v245 = vld [vmem:[%s227 + $0x60] sm:$0xff]
        %v246 = vld [vmem:[%s227 + $0x68] sm:$0xff]
        %v247 = vld [vmem:[%s227 + $0x70] sm:$0xff]
        %v248 = vld [vmem:[%s227 + $0x78] sm:$0xff]
        %v249 = vld [vmem:[%s227 + $0x80] sm:$0xff]
        %v250 = vld [vmem:[%s227 + $0x88] sm:$0xff]
        %v251 = vld [vmem:[%s227 + $0x90] sm:$0xff]
        %v252 = vld [vmem:[%s227 + $0x98] sm:$0xff]
        %v253 = vld [vmem:[%s227 + $0xa0] sm:$0xff]
        %v254 = vld [vmem:[%s227 + $0xa8] sm:$0xff]
        %v255 = vld [vmem:[%s227 + $0xb0] sm:$0xff]
        %v256 = vld [vmem:[%s227 + $0xb8] sm:$0xff]
        %v257 = vld [vmem:[%s227 + $0xc0] sm:$0xff]
        %v258 = vld [vmem:[%s227 + $0xc8] sm:$0xff]
        %v259 = vld [vmem:[%s227 + $0xd0] sm:$0xff]
        %v260 = vld [vmem:[%s227 + $0xd8] sm:$0xff]
        %v261 = vld [vmem:[%s227 + $0xe0] sm:$0xff]
        %v262 = vld [vmem:[%s227 + $0xe8] sm:$0xff]
        %v263 = vld [vmem:[%s227 + $0xf0] sm:$0xff]
        %v264 = vld [vmem:[%s227 + $0xf8] sm:$0xff]
        %v265 = vld [vmem:[%s230] sm:$0x1]
        %v267 = vlaneseq
        %v268 = vshrl.u32 %v267, 7
        %v269 = vsub.s32 0, %v268
        %v270 = vrot.slane %v265, %v269
        %272 = vmatprep.subr.mxu0 0.0
        %273 = vmatpush1.msra.mxu0 %v233
        %274 = vmatprep.subr.mxu0 0.0
        %275 = vmatpush1.msra.mxu0 %v234
        %276 = vmatprep.subr.mxu0 0.0
        %277 = vmatpush1.msra.mxu0 %v235
        %278 = vmatprep.subr.mxu0 0.0
        %279 = vmatpush1.msra.mxu0 %v236
        %280 = vmatprep.subr.mxu0 0.0
        %281 = vmatpush1.msra.mxu0 %v237
        %282 = vmatprep.subr.mxu0 0.0
        %283 = vmatpush1.msra.mxu0 %v238
        %284 = vmatprep.subr.mxu0 0.0
        %285 = vmatpush1.msra.mxu0 %v239
        %286 = vmatprep.subr.mxu0 0.0
        %287 = vmatpush1.msra.mxu0 %v240
        %288 = vmatprep.subr.mxu0 0.0
        %289 = vmatpush1.msra.mxu0 %v241
        %290 = vmatprep.subr.mxu0 0.0
        %291 = vmatpush1.msra.mxu0 %v242
        %292 = vmatprep.subr.mxu0 0.0
        %293 = vmatpush1.msra.mxu0 %v243
        %294 = vmatprep.subr.mxu0 0.0
        %295 = vmatpush1.msra.mxu0 %v244
        %296 = vmatprep.subr.mxu0 0.0
        %297 = vmatpush1.msra.mxu0 %v245
        %298 = vmatprep.subr.mxu0 0.0
        %299 = vmatpush1.msra.mxu0 %v246
        %300 = vmatprep.subr.mxu0 0.0
        %301 = vmatpush1.msra.mxu0 %v247
        %302 = vmatprep.subr.mxu0 0.0
        %303 = vmatpush1.msra.mxu0 %v248
        %304 = vmatprep.subr.mxu0 0.0
        %305 = vmatpush1.msra.mxu0 %v249
        %306 = vmatprep.subr.mxu0 0.0
        %307 = vmatpush1.msra.mxu0 %v250
        %308 = vmatprep.subr.mxu0 0.0
        %309 = vmatpush1.msra.mxu0 %v251
        %310 = vmatprep.subr.mxu0 0.0
        %311 = vmatpush1.msra.mxu0 %v252
        %312 = vmatprep.subr.mxu0 0.0
        %313 = vmatpush1.msra.mxu0 %v253
        %314 = vmatprep.subr.mxu0 0.0
        %315 = vmatpush1.msra.mxu0 %v254
        %316 = vmatprep.subr.mxu0 0.0
        %317 = vmatpush1.msra.mxu0 %v255
        %318 = vmatprep.subr.mxu0 0.0
        %319 = vmatpush1.msra.mxu0 %v256
        %320 = vmatprep.subr.mxu0 0.0
        %321 = vmatpush1.msra.mxu0 %v257
        %322 = vmatprep.subr.mxu0 0.0
        %323 = vmatpush1.msra.mxu0 %v258
        %324 = vmatprep.subr.mxu0 0.0
        %325 = vmatpush1.msra.mxu0 %v259
        %326 = vmatprep.subr.mxu0 0.0
        %327 = vmatpush1.msra.mxu0 %v260
        %328 = vmatprep.subr.mxu0 0.0
        %329 = vmatpush1.msra.mxu0 %v261
        %330 = vmatprep.subr.mxu0 0.0
        %331 = vmatpush1.msra.mxu0 %v262
        %332 = vmatprep.subr.mxu0 0.0
        %333 = vmatpush1.msra.mxu0 %v263
        %334 = vmatprep.subr.mxu0 0.0
        %335 = vmatpush1.msra.mxu0 %v264
        %336 = vmatprep.mubr.f32.mxu0 %v232
        %337 = vmatmul.mubr.f32.gmra.mrb[0].mxu0 %v231
        %v338 = vpop.f32.mrb[0].mxu0
        %v339 = vadd.f32 %v270, %v338
        %v340 = vpop.f32.mrb[0].mxu0
        %341 = vdwg.mxu0
        %vm342 = vcmask 121856
        %343 = vst.msk [vmem:[%s213] sm:$0xff] %vm342, %v339
        %s344 = sand.u32 %s119, 1
        %s345 = scalar_lea.sflag [#allocation3], %s344
        %s346 = sand.u32 %s119, 1
        %s347 = smul.addr %s346, 8
        %s348 = scalar_lea.vmem [#allocation2], %s347
        // Predicated region
        $region33: #{tpu_custom_call.1} parent=31 // pred_check
          %p349 = pneg %p129
        $region34: #{tpu_custom_call.1} parent=31 // pred_check_branch
          %351 = sbr.rel (%p349) target = $region36
        $region35: #{tpu_custom_call.1} parent=31 // pred_region
          %s353 = ssub.s32 128, 128
          %354 = vsyncadd %s345, %s353
          %s355 = sadd.s32 %s22, %s21
          %s356 = smul.addr %s355, 128
          %s357 = scalar_lea.hbm %s3, %s356
          %s359 = sshll.u32 %s348, 4
          %s360 = int_to_ptr.vmem [resolvable:$true] %s359
          %362 = dma.vmem_to_hbm [thread:$0]  %s360, 128, %s357, %s345
        $region36: #{tpu_custom_call.1} parent=31 // pred_fallthru
          _
      $region32: #{tpu_custom_call.1} parent=5 // pred_fallthru
        _
      %p363 = scmp.le.s32.totalorder 2, %s12
      // Predicated region
      $region37: #{tpu_custom_call.1} parent=5 // pred_check
        %p364 = pneg %p363
      $region38: #{tpu_custom_call.1} parent=5 // pred_check_branch
        %366 = sbr.rel (%p364) target = $region40
      $region39: #{tpu_custom_call.1} parent=5 // pred_region
        %s367 = ssub.s32 %s12, 2
        // Predicated region
        $region41: #{tpu_custom_call.1} parent=39 // pred_check
          %p368 = pneg %p135
        $region42: #{tpu_custom_call.1} parent=39 // pred_check_branch
          %370 = sbr.rel (%p368) target = $region44
        $region43: #{tpu_custom_call.1} parent=39 // pred_region
          %s371 = sand.u32 %s120, 1
          %s372 = scalar_lea.sflag [#allocation3], %s371
          %s373 = sand.u32 %s120, 1
          %s374 = smul.addr %s373, 8
          %s375 = scalar_lea.vmem [#allocation2], %s374
          %376 = dma.done %s372, 128
        $region44: #{tpu_custom_call.1} parent=39 // pred_fallthru
          _
      $region40: #{tpu_custom_call.1} parent=5 // pred_fallthru
        _
    $region6: #{tpu_custom_call.1} parent=1 // loop_footer
      %s16 = sadd.s32 1, %s12
    $region7: #{tpu_custom_call.1} parent=1 // loop_footer_branch
      %11 = sbr.rel target = $region3
    $region8: #{tpu_custom_call.1} parent=1 // loop_exit
      _
    %377 = vsyncpa [#allocation3], 1
    %s378 = scalar_lea.sflag [#allocation3], 1
    %379 = vsyncpa %s378, 1

</llo_original>
